<compile_context>
chip_gen: v5e
topology: v5e:2x2
jax: 0.10.0
libtpu: 0.0.40
codegen_flags: <defaults>
</compile_context>

<pallas_src>
import jax
import jax.numpy as jnp
from jax import lax
from jax.experimental import pallas as pl
from jax.experimental.pallas import tpu as pltpu

LANE = 128
SUBLANE = 8
MIN_TILE = SUBLANE * LANE  # 1024 elements = one (8, 128) f32 tile


def _default_tm():
    """Pick the streaming block size (rows of 128 lanes) for this chip."""
    try:
        info = pltpu.get_tpu_info()
        vmem = getattr(info, "vmem_capacity_bytes", None)
        # v7x-class: 64 MiB VMEM/TC but ~3.2 TB/s HBM -> per-step overhead
        # dominates at small tiles, so go bigger there.
        if vmem is not None and vmem <= 80 * 1024 * 1024:
            return 8192
    except Exception:
        pass
    return 4096


def _make_kernel(tm, chunk, rows):
    """Build the partial-sum kernel with static tiling constants baked in."""
    n_chunks = tm // chunk
    needs_mask = (rows % tm) != 0  # only the last (edge) block can be partial

    def fold(x):
        # (chunk, LANE) -> (8, LANE): pure vreg adds on the VPU, no XLU.
        return jnp.sum(x.reshape(chunk // SUBLANE, SUBLANE, LANE), axis=0)

    def kernel(p_ref, t_ref, o_pt_ref, o_p_ref, o_t_ref):
        i = pl.program_id(0)

        @pl.when(i == 0)
        def _():
            o_pt_ref[...] = jnp.zeros_like(o_pt_ref)
            o_p_ref[...] = jnp.zeros_like(o_p_ref)
            o_t_ref[...] = jnp.zeros_like(o_t_ref)

        def scan_block(masked):
            acc_pt = jnp.zeros((SUBLANE, LANE), jnp.float32)
            acc_p = jnp.zeros((SUBLANE, LANE), jnp.float32)
            acc_t = jnp.zeros((SUBLANE, LANE), jnp.float32)
            valid = rows - i * tm  # valid rows in this (possibly edge) block
            for j in range(n_chunks):
                base = j * chunk  # static slice start
                p_c = p_ref[pl.ds(base, chunk), :].astype(jnp.float32)
                t_c = t_ref[pl.ds(base, chunk), :].astype(jnp.float32)
                if masked:
                    # Mask BEFORE the multiply/adds: rows past the array end
                    # contain garbage (possibly NaN) from the edge-block DMA.
                    row = lax.broadcasted_iota(jnp.int32, (chunk, LANE), 0)
                    m = (row + base) < valid
                    p_c = jnp.where(m, p_c, 0.0)
                    t_c = jnp.where(m, t_c, 0.0)
                acc_pt = acc_pt + fold(p_c * t_c)
                acc_p = acc_p + fold(p_c)
                acc_t = acc_t + fold(t_c)
            o_pt_ref[...] += acc_pt
            o_p_ref[...] += acc_p
            o_t_ref[...] += acc_t

        if needs_mask:
            valid = rows - i * tm

            @pl.when(valid >= tm)  # full block: fast path, no masking
            def _():
                scan_block(False)

            @pl.when(valid < tm)   # partial edge block: mask stale rows
            def _():
                scan_block(True)
        else:
            scan_block(False)

    return kernel


def _tversky_sums(p2, t2, tm, chunk):
    """Return (sum(p*t), sum(p), sum(t)) partials as three (8, 128) arrays."""
    rows = p2.shape[0]
    nblocks = pl.cdiv(rows, tm)

    kernel = _make_kernel(tm, chunk, rows)

    out_shape = jax.ShapeDtypeStruct((SUBLANE, LANE), jnp.float32)
    out_spec = pl.BlockSpec((SUBLANE, LANE), lambda i: (0, 0))
    in_spec = pl.BlockSpec((tm, LANE), lambda i: (i, 0))

    return pl.pallas_call(
        kernel,
        out_shape=(out_shape, out_shape, out_shape),
        grid_spec=pltpu.PrefetchScalarGridSpec(
            num_scalar_prefetch=0,
            grid=(nblocks,),
            in_specs=[in_spec, in_spec],
            out_specs=(out_spec, out_spec, out_spec),
        ),
        compiler_params=pltpu.CompilerParams(
            dimension_semantics=("arbitrary",),
            vmem_limit_bytes=32 * 1024 * 1024),
    )(p2, t2)


def tversky_loss(prediction, target, alpha=0.5, beta=0.5, eps=1e-6,
                 tm=None, chunk=256):
    """Pallas implementation of TverskyLoss.forward (scalar output)."""
    p = prediction.reshape(-1)
    t = target.reshape(-1)
    n = p.shape[0]

    # Aligned prefix handled by the kernel; flat remainder (< 1024 elements)
    # handled directly below -- no full-array jnp.pad copy.
    n_main = (n // MIN_TILE) * MIN_TILE

    tp = jnp.float32(0.0)
    sp = jnp.float32(0.0)
    st = jnp.float32(0.0)

    if n_main > 0:
        rows = n_main // LANE                      # multiple of 8
        if tm is None:
            tm = _default_tm()
        tm = min(tm, rows)                         # rows, tm multiples of 8
        assert tm % SUBLANE == 0
        if tm % chunk != 0:
            chunk = tm                             # single chunk per block
        assert chunk % SUBLANE == 0

        sums_pt, sums_p, sums_t = _tversky_sums(
            p[:n_main].reshape(rows, LANE),
            t[:n_main].reshape(rows, LANE),
            tm, chunk)
        tp = tp + jnp.sum(sums_pt)
        sp = sp + jnp.sum(sums_p)
        st = st + jnp.sum(sums_t)

    if n_main != n:
        p_rem = p[n_main:].astype(jnp.float32)
        t_rem = t[n_main:].astype(jnp.float32)
        tp = tp + jnp.sum(p_rem * t_rem)
        sp = sp + jnp.sum(p_rem)
        st = st + jnp.sum(t_rem)

    fp = sp - tp                        # sum((1 - t) * p)
    fn = st - tp                        # sum(t * (1 - p))
    tversky = tp / (tp + alpha * fp + beta * fn + eps)
    return 1.0 - tversky


def tversky_loss_ref(prediction, target, alpha=0.5, beta=0.5, eps=1e-6):
    """Pure-JAX reference mirroring the PyTorch forward."""
    prediction = prediction.astype(jnp.float32)
    target = target.astype(jnp.float32)
    tp = jnp.sum(prediction * target)
    fp = jnp.sum((1.0 - target) * prediction)
    fn = jnp.sum(target * (1.0 - prediction))
    tversky = tp / (tp + alpha * fp + beta * fn + eps)
    return 1.0 - tversky


if __name__ == "__main__":
    key = jax.random.PRNGKey(0)

    def make_inputs(k, shape):
        kp, kt = jax.random.split(k)
        pred = jax.nn.sigmoid(jax.random.normal(kp, shape, dtype=jnp.float32))
        targ = (jax.random.uniform(kt, shape, dtype=jnp.float32) > 0.5).astype(
            jnp.float32)
        return pred, targ

    # Case 1: NCHW (2, 4, 16, 16) -- flat size multiple of 1024, single block.
    k1, k2, k3, key = jax.random.split(key, 4)
    pred1, targ1 = make_inputs(k1, (2, 4, 16, 16))
    l1 = jax.block_until_ready(tversky_loss(pred1, targ1))
    r1 = jax.block_until_ready(tversky_loss_ref(pred1, targ1))
    assert jnp.allclose(l1, r1, rtol=2e-5, atol=1e-5), (l1, r1)

    # Case 2: ragged shape -> aligned-prefix kernel + jnp remainder path.
    pred2, targ2 = make_inputs(k2, (2, 3, 17, 19))
    l2 = jax.block_until_ready(tversky_loss(pred2, targ2))
    r2 = jax.block_until_ready(tversky_loss_ref(pred2, targ2))
    assert jnp.allclose(l2, r2, rtol=2e-5, atol=1e-5), (l2, r2)

    # Case 3: larger ragged shape -> multiple blocks at default tm, masked
    # partial edge block, multi-chunk inner loop, and jnp remainder.
    pred3, targ3 = make_inputs(k3, (4, 4, 200, 173))
    l3 = jax.block_until_ready(tversky_loss(pred3, targ3))
    r3 = jax.block_until_ready(tversky_loss_ref(pred3, targ3))
    assert jnp.allclose(l3, r3, rtol=2e-5, atol=1e-5), (l3, r3)

    print("KERNEL_OK")
</pallas_src>

<mosaic_0001>
module attributes {stable_mosaic.version = 11 : i64} {
  func.func @kernel(%arg0: i32, %arg1: memref<16x128xf32, #tpu.memory_space<vmem>>, %arg2: memref<16x128xf32, #tpu.memory_space<vmem>>, %arg3: memref<8x128xf32, #tpu.memory_space<vmem>>, %arg4: memref<8x128xf32, #tpu.memory_space<vmem>>, %arg5: memref<8x128xf32, #tpu.memory_space<vmem>>) attributes {dimension_semantics = [#tpu.dimension_semantics<arbitrary>], iteration_bounds = array<i64: 1>, scalar_prefetch = 0 : i64, scratch_operands = 0 : i64, tpu.core_type = #tpu.core_type<tc>, window_params = [{transform_indices = @transform_0, window_bounds = array<i64: 16, 128>}, {transform_indices = @transform_1, window_bounds = array<i64: 16, 128>}, {pipeline_mode = #tpu.pipeline_mode<synchronous>, transform_indices = @transform_2, window_bounds = array<i64: 8, 128>}, {pipeline_mode = #tpu.pipeline_mode<synchronous>, transform_indices = @transform_3, window_bounds = array<i64: 8, 128>}, {pipeline_mode = #tpu.pipeline_mode<synchronous>, transform_indices = @transform_4, window_bounds = array<i64: 8, 128>}]} {
    %c0_i32 = arith.constant 0 : i32
    %0 = arith.cmpi eq, %arg0, %c0_i32 : i32
    %1 = arith.extui %0 : i1 to i32
    %c0_i32_0 = arith.constant 0 : i32
    %2 = arith.cmpi ne, %1, %c0_i32_0 : i32
    scf.if %2 {
      %cst_21 = arith.constant 0.000000e+00 : f32
      %27 = vector.broadcast %cst_21 : f32 to vector<8x128xf32>
      %c0_22 = arith.constant 0 : index
      %c0_23 = arith.constant 0 : index
      %28 = vector.load %arg3[%c0_22, %c0_23] : memref<8x128xf32, #tpu.memory_space<vmem>>, vector<8x128xf32>
      tpu.vector_store %arg3[%c0_22, %c0_23], %27 {strides = array<i32>} : memref<8x128xf32, #tpu.memory_space<vmem>>, vector<8x128xf32>,
      %cst_24 = arith.constant 0.000000e+00 : f32
      %29 = vector.broadcast %cst_24 : f32 to vector<8x128xf32>
      %c0_25 = arith.constant 0 : index
      %c0_26 = arith.constant 0 : index
      %30 = vector.load %arg4[%c0_25, %c0_26] : memref<8x128xf32, #tpu.memory_space<vmem>>, vector<8x128xf32>
      tpu.vector_store %arg4[%c0_25, %c0_26], %29 {strides = array<i32>} : memref<8x128xf32, #tpu.memory_space<vmem>>, vector<8x128xf32>,
      %cst_27 = arith.constant 0.000000e+00 : f32
      %31 = vector.broadcast %cst_27 : f32 to vector<8x128xf32>
      %c0_28 = arith.constant 0 : index
      %c0_29 = arith.constant 0 : index
      %32 = vector.load %arg5[%c0_28, %c0_29] : memref<8x128xf32, #tpu.memory_space<vmem>>, vector<8x128xf32>
      tpu.vector_store %arg5[%c0_28, %c0_29], %31 {strides = array<i32>} : memref<8x128xf32, #tpu.memory_space<vmem>>, vector<8x128xf32>,
    } else {
    }
    %cst = arith.constant 0.000000e+00 : f32
    %3 = vector.broadcast %cst : f32 to vector<8x128xf32>
    %cst_1 = arith.constant 0.000000e+00 : f32
    %4 = vector.broadcast %cst_1 : f32 to vector<8x128xf32>
    %cst_2 = arith.constant 0.000000e+00 : f32
    %5 = vector.broadcast %cst_2 : f32 to vector<8x128xf32>
    %c0 = arith.constant 0 : index
    %c0_3 = arith.constant 0 : index
    %6 = vector.load %arg1[%c0, %c0_3] : memref<16x128xf32, #tpu.memory_space<vmem>>, vector<16x128xf32>
    %c0_4 = arith.constant 0 : index
    %c0_5 = arith.constant 0 : index
    %7 = vector.load %arg2[%c0_4, %c0_5] : memref<16x128xf32, #tpu.memory_space<vmem>>, vector<16x128xf32>
    %8 = arith.mulf %6, %7 : vector<16x128xf32>
    %9 = vector.shape_cast %8 : vector<16x128xf32> to vector<2x8x128xf32>
    %cst_6 = arith.constant dense<0.000000e+00> : vector<8x128xf32>
    %10 = vector.multi_reduction <add>, %9, %cst_6 [0] : vector<2x8x128xf32> to vector<8x128xf32>
    %11 = arith.addf %3, %10 : vector<8x128xf32>
    %12 = vector.shape_cast %6 : vector<16x128xf32> to vector<2x8x128xf32>
    %cst_7 = arith.constant dense<0.000000e+00> : vector<8x128xf32>
    %13 = vector.multi_reduction <add>, %12, %cst_7 [0] : vector<2x8x128xf32> to vector<8x128xf32>
    %14 = arith.addf %4, %13 : vector<8x128xf32>
    %15 = vector.shape_cast %7 : vector<16x128xf32> to vector<2x8x128xf32>
    %cst_8 = arith.constant dense<0.000000e+00> : vector<8x128xf32>
    %16 = vector.multi_reduction <add>, %15, %cst_8 [0] : vector<2x8x128xf32> to vector<8x128xf32>
    %17 = arith.addf %5, %16 : vector<8x128xf32>
    %c0_9 = arith.constant 0 : index
    %c0_10 = arith.constant 0 : index
    %18 = vector.load %arg3[%c0_9, %c0_10] : memref<8x128xf32, #tpu.memory_space<vmem>>, vector<8x128xf32>
    %19 = arith.addf %18, %11 : vector<8x128xf32>
    %c0_11 = arith.constant 0 : index
    %c0_12 = arith.constant 0 : index
    %20 = vector.load %arg3[%c0_11, %c0_12] : memref<8x128xf32, #tpu.memory_space<vmem>>, vector<8x128xf32>
    tpu.vector_store %arg3[%c0_11, %c0_12], %19 {strides = array<i32>} : memref<8x128xf32, #tpu.memory_space<vmem>>, vector<8x128xf32>,
    %c0_13 = arith.constant 0 : index
    %c0_14 = arith.constant 0 : index
    %21 = vector.load %arg4[%c0_13, %c0_14] : memref<8x128xf32, #tpu.memory_space<vmem>>, vector<8x128xf32>
    %22 = arith.addf %21, %14 : vector<8x128xf32>
    %c0_15 = arith.constant 0 : index
    %c0_16 = arith.constant 0 : index
    %23 = vector.load %arg4[%c0_15, %c0_16] : memref<8x128xf32, #tpu.memory_space<vmem>>, vector<8x128xf32>
    tpu.vector_store %arg4[%c0_15, %c0_16], %22 {strides = array<i32>} : memref<8x128xf32, #tpu.memory_space<vmem>>, vector<8x128xf32>,
    %c0_17 = arith.constant 0 : index
    %c0_18 = arith.constant 0 : index
    %24 = vector.load %arg5[%c0_17, %c0_18] : memref<8x128xf32, #tpu.memory_space<vmem>>, vector<8x128xf32>
    %25 = arith.addf %24, %17 : vector<8x128xf32>
    %c0_19 = arith.constant 0 : index
    %c0_20 = arith.constant 0 : index
    %26 = vector.load %arg5[%c0_19, %c0_20] : memref<8x128xf32, #tpu.memory_space<vmem>>, vector<8x128xf32>
    tpu.vector_store %arg5[%c0_19, %c0_20], %25 {strides = array<i32>} : memref<8x128xf32, #tpu.memory_space<vmem>>, vector<8x128xf32>,
    return
  }
  func.func @transform_0(%arg0: i32) -> (i32, i32) {
    %c0_i32 = arith.constant 0 : i32
    %c0_i32_0 = arith.constant 0 : i32
    return %arg0, %c0_i32 : i32, i32
  }
  func.func @transform_1(%arg0: i32) -> (i32, i32) {
    %c0_i32 = arith.constant 0 : i32
    %c0_i32_0 = arith.constant 0 : i32
    return %arg0, %c0_i32 : i32, i32
  }
  func.func @transform_2(%arg0: i32) -> (i32, i32) {
    %c0_i32 = arith.constant 0 : i32
    %c0_i32_0 = arith.constant 0 : i32
    %c0_i32_1 = arith.constant 0 : i32
    return %c0_i32, %c0_i32_0 : i32, i32
  }
  func.func @transform_3(%arg0: i32) -> (i32, i32) {
    %c0_i32 = arith.constant 0 : i32
    %c0_i32_0 = arith.constant 0 : i32
    %c0_i32_1 = arith.constant 0 : i32
    return %c0_i32, %c0_i32_0 : i32, i32
  }
  func.func @transform_4(%arg0: i32) -> (i32, i32) {
    %c0_i32 = arith.constant 0 : i32
    %c0_i32_0 = arith.constant 0 : i32
    %c0_i32_1 = arith.constant 0 : i32
    return %c0_i32, %c0_i32_0 : i32, i32
  }
}

</mosaic_0001>

<llo_original>
// kernel: tpu_custom_call.1
$region0: #{tpu_custom_call.1}
  #allocation0 [shape = 'u32[]', space=smem, size = 0x4, offset = 0x4, fixed_abs, tag = 'smem constant byte address 0x4 - core index']
  #allocation1 [shape = 'u32[72,128]{1,0:T(1,128)}', space=vmem, size = 0x9000, scoped, tag = 'internal scratch']
  %s0 = inlined_call_operand.hbm [shape: f32[16,128], index: 0, kind: input, shape index: {}]
  %s1 = inlined_call_operand.hbm [shape: f32[16,128], index: 1, kind: input, shape index: {}]
  %s2 = inlined_call_operand.hbm [shape: f32[8,128], index: 2, kind: output, shape index: {0}]
  %s3 = inlined_call_operand.hbm [shape: f32[8,128], index: 3, kind: output, shape index: {1}]
  %s4 = inlined_call_operand.hbm [shape: f32[8,128], index: 4, kind: output, shape index: {2}]
  %5 = xla_tuple %s2, %s3, %s4
  %s6 = sld [smem:[#allocation0]]
  $region46: #{tpu_custom_call.1} parent=0
    _
  %s8 = ssub.s32 1, %s6
  %s9 = scalar_select 0, %s8, %s6
  $region1: #{tpu_custom_call.1} parent=0
    #allocation2 [shape = 'u8[8192]{0}', space=vmem, size = 0x2000, scoped, tag = 'input window, operand 0, single buffered']
    #allocation3 [shape = 's32[1]{0}', space=sflag, size = 0x4, scoped, tag = 'scoped memory for tpu_custom_call.1']
    #allocation4 [shape = 's32[1]{0}', space=sflag, size = 0x4, scoped, tag = 'scoped memory for tpu_custom_call.1']
    #allocation5 [shape = 'u8[8192]{0}', space=vmem, size = 0x2000, scoped, tag = 'input window, operand 1, single buffered']
    #allocation6 [shape = 's32[1]{0}', space=sflag, size = 0x4, scoped, tag = 'scoped memory for tpu_custom_call.1']
    #allocation7 [shape = 'u8[4096]{0}', space=vmem, size = 0x1000, scoped, tag = 'output window, operand 0, single buffered']
    #allocation8 [shape = 'u8[4096]{0}', space=vmem, size = 0x1000, scoped, tag = 'output window, operand 1, single buffered']
    #allocation9 [shape = 's32[1]{0}', space=sflag, size = 0x4, scoped, tag = 'scoped memory for tpu_custom_call.1']
    #allocation10 [shape = 'u8[4096]{0}', space=vmem, size = 0x1000, scoped, tag = 'output window, operand 2, single buffered']
    %10 = vsyncpa [#allocation3], 0
    %11 = vsyncpa [#allocation6], 0
    %12 = vsyncpa [#allocation4], 0
    %13 = vsyncpa [#allocation9], 0
    // Predicated region
    $region2: #{tpu_custom_call.1} parent=1 // pred_check
      _
    $region3: #{tpu_custom_call.1} parent=1 // pred_check_branch
      %15 = sbr.rel (0) target = $region5
    $region4: #{tpu_custom_call.1} parent=1 // pred_region
      %17 = vsyncadd [#allocation3], 0
      %s18 = sshll.u32 %s0, 4
      %s19 = int_to_ptr.hbm [resolvable:$true] %s18
      %s20 = sshll.u32 [#allocation2], 4
      %s21 = int_to_ptr.vmem [resolvable:$true] %s20
      %26 = dma.hbm_to_vmem [thread:$0]  %s19, 256, %s21, [#allocation3], 128, 128, 8
    $region5: #{tpu_custom_call.1} parent=1 // pred_fallthru
      _
    // Predicated region
    $region6: #{tpu_custom_call.1} parent=1 // pred_check
      _
    $region7: #{tpu_custom_call.1} parent=1 // pred_check_branch
      %28 = sbr.rel (0) target = $region9
    $region8: #{tpu_custom_call.1} parent=1 // pred_region
      %30 = vsyncadd [#allocation6], 0
      %s31 = sshll.u32 %s1, 4
      %s32 = int_to_ptr.hbm [resolvable:$true] %s31
      %s33 = sshll.u32 [#allocation5], 4
      %s34 = int_to_ptr.vmem [resolvable:$true] %s33
      %39 = dma.hbm_to_vmem [thread:$0]  %s32, 256, %s34, [#allocation6], 128, 128, 8
    $region9: #{tpu_custom_call.1} parent=1 // pred_fallthru
      _
    // Predicated region
    $region10: #{tpu_custom_call.1} parent=1 // pred_check
      _
    $region11: #{tpu_custom_call.1} parent=1 // pred_check_branch
      %41 = sbr.rel (0) target = $region13
    $region12: #{tpu_custom_call.1} parent=1 // pred_region
      %43 = dma.done [#allocation3], 256
    $region13: #{tpu_custom_call.1} parent=1 // pred_fallthru
      _
    // Predicated region
    $region14: #{tpu_custom_call.1} parent=1 // pred_check
      _
    $region15: #{tpu_custom_call.1} parent=1 // pred_check_branch
      %45 = sbr.rel (0) target = $region17
    $region16: #{tpu_custom_call.1} parent=1 // pred_region
      %47 = dma.done [#allocation6], 256
    $region17: #{tpu_custom_call.1} parent=1 // pred_fallthru
      _
    %p48 = scmp.eq.s32.totalorder 0, 0
    // Predicated region
    $region18: #{tpu_custom_call.1} parent=1 // pred_check
      %p49 = pneg %p48
    $region19: #{tpu_custom_call.1} parent=1 // pred_check_branch
      %51 = sbr.rel (%p49) target = $region21
    $region20: #{tpu_custom_call.1} parent=1 // pred_region
      %52 = vst [vmem:[#allocation7] sm:$0xff] 0.0
      %53 = vst [vmem:[#allocation8] sm:$0xff] 0.0
      %54 = vst [vmem:[#allocation10] sm:$0xff] 0.0
    $region21: #{tpu_custom_call.1} parent=1 // pred_fallthru
      _
    %v55 = vld [vmem:[#allocation2] sm:$0xff]
    %v56 = vld [vmem:[#allocation2 + $0x8] sm:$0xff]
    %v57 = vld [vmem:[#allocation5] sm:$0xff]
    %v58 = vld [vmem:[#allocation5 + $0x8] sm:$0xff]
    %v59 = vmul.f32 %v55, %v57
    %v60 = vmul.f32 %v56, %v58
    %v61 = vadd.f32 %v59, %v60
    %v62 = vadd.f32 %v61, 0.0
    %v63 = vadd.f32 %v55, %v56
    %v64 = vadd.f32 %v63, 0.0
    %v65 = vadd.f32 %v57, %v58
    %v66 = vadd.f32 %v65, 0.0
    %v67 = vld [vmem:[#allocation7] sm:$0xff]
    %v68 = vadd.f32 %v67, %v62
    %69 = vst [vmem:[#allocation7] sm:$0xff] %v68
    %v70 = vld [vmem:[#allocation8] sm:$0xff]
    %v71 = vadd.f32 %v70, %v64
    %72 = vst [vmem:[#allocation8] sm:$0xff] %v71
    %v73 = vld [vmem:[#allocation10] sm:$0xff]
    %v74 = vadd.f32 %v73, %v66
    %75 = vst [vmem:[#allocation10] sm:$0xff] %v74
    // Predicated region
    $region22: #{tpu_custom_call.1} parent=1 // pred_check
      _
    $region23: #{tpu_custom_call.1} parent=1 // pred_check_branch
      %77 = sbr.rel (0) target = $region25
    $region24: #{tpu_custom_call.1} parent=1 // pred_region
      %79 = vsyncadd [#allocation4], 0
      %s81 = sshll.u32 [#allocation7], 4
      %s82 = int_to_ptr.vmem [resolvable:$true] %s81
      %s83 = sshll.u32 %s2, 4
      %s84 = int_to_ptr.hbm [resolvable:$true] %s83
      %86 = dma.vmem_to_hbm [thread:$0]  %s82, 128, %s84, [#allocation4]
    $region25: #{tpu_custom_call.1} parent=1 // pred_fallthru
      _
    // Predicated region
    $region26: #{tpu_custom_call.1} parent=1 // pred_check
      _
    $region27: #{tpu_custom_call.1} parent=1 // pred_check_branch
      %88 = sbr.rel (0) target = $region29
    $region28: #{tpu_custom_call.1} parent=1 // pred_region
      %90 = vsyncadd [#allocation9], 0
      %s92 = sshll.u32 [#allocation8], 4
      %s93 = int_to_ptr.vmem [resolvable:$true] %s92
      %s94 = sshll.u32 %s3, 4
      %s95 = int_to_ptr.hbm [resolvable:$true] %s94
      %97 = dma.vmem_to_hbm [thread:$0]  %s93, 128, %s95, [#allocation9]
    $region29: #{tpu_custom_call.1} parent=1 // pred_fallthru
      _
    // Predicated region
    $region30: #{tpu_custom_call.1} parent=1 // pred_check
      _
    $region31: #{tpu_custom_call.1} parent=1 // pred_check_branch
      %99 = sbr.rel (0) target = $region33
    $region32: #{tpu_custom_call.1} parent=1 // pred_region
      %101 = vsyncadd [#allocation9], 0
      %s103 = sshll.u32 [#allocation10], 4
      %s104 = int_to_ptr.vmem [resolvable:$true] %s103
      %s105 = sshll.u32 %s4, 4
      %s106 = int_to_ptr.hbm [resolvable:$true] %s105
      %108 = dma.vmem_to_hbm [thread:$0]  %s104, 128, %s106, [#allocation9]
    $region33: #{tpu_custom_call.1} parent=1 // pred_fallthru
      _
    // Predicated region
    $region34: #{tpu_custom_call.1} parent=1 // pred_check
      _
    $region35: #{tpu_custom_call.1} parent=1 // pred_check_branch
      %110 = sbr.rel (0) target = $region37
    $region36: #{tpu_custom_call.1} parent=1 // pred_region
      %112 = dma.done [#allocation4], 128
    $region37: #{tpu_custom_call.1} parent=1 // pred_fallthru
      _
    // Predicated region
    $region38: #{tpu_custom_call.1} parent=1 // pred_check
      _
    $region39: #{tpu_custom_call.1} parent=1 // pred_check_branch
      %114 = sbr.rel (0) target = $region41
    $region40: #{tpu_custom_call.1} parent=1 // pred_region
      %116 = dma.done [#allocation9], 128
    $region41: #{tpu_custom_call.1} parent=1 // pred_fallthru
      _
    // Predicated region
    $region42: #{tpu_custom_call.1} parent=1 // pred_check
      _
    $region43: #{tpu_custom_call.1} parent=1 // pred_check_branch
      %118 = sbr.rel (0) target = $region45
    $region44: #{tpu_custom_call.1} parent=1 // pred_region
      %120 = dma.done [#allocation9], 128
    $region45: #{tpu_custom_call.1} parent=1 // pred_fallthru
      _
    %121 = vsyncpa [#allocation3], 1
    %122 = vsyncpa [#allocation6], 1
    %123 = vsyncpa [#allocation4], 1
    %124 = vsyncpa [#allocation9], 1

</llo_original>
